<compile_context>
chip_gen: v7x
topology: tpu7x:2x2x1
jax: 0.10.0
libtpu: 0.0.40
codegen_flags: <defaults>
</compile_context>

<pallas_src>
import jax
import jax.numpy as jnp
from jax import lax
from jax.experimental import pallas as pl
from jax.experimental.pallas import tpu as pltpu


def _critic_kernel(x_ref, w1_ref, b1_ref, w2_ref, b2_ref, w3_ref, b3_ref,
                   out_ref):
    """One batch tile.  x_ref: (Bt, IN); weights (out, in); out_ref: (1, Bt)."""
    x = x_ref[...].astype(jnp.float32)                      # (Bt, IN)

    # Layer 1: (H1, IN) x (Bt, IN)^T -> (H1, Bt).  "NT" matmul keeps batch on
    # the lane/N axis; no explicit transpose materialized.
    h = lax.dot_general(w1_ref[...], x, (((1,), (1,)), ((), ())),
                        preferred_element_type=jnp.float32)
    h = jnp.maximum(h + b1_ref[...], 0.0)                   # (H1, Bt)

    # Layer 2: (H2, H1) @ (H1, Bt) -> (H2, Bt).
    h = jnp.dot(w2_ref[...], h, preferred_element_type=jnp.float32)
    h = jnp.maximum(h + b2_ref[...], 0.0)                   # (H2, Bt)

    # Layer 3 (H2 -> 1): fused multiply + sublane reduce; avoids an N=1 MXU
    # pass and keeps the result lane-dense in the batch.
    y = jnp.sum(h * w3_ref[...], axis=0, keepdims=True) + b3_ref[...]
    out_ref[...] = y.astype(out_ref.dtype)                  # (1, Bt)


def _round_up(a, m):
    return (a + m - 1) // m * m


def critic_forward(state, params, *, batch_tile=1024, input_dtype=jnp.float32):
    """state: (B, n_nodes, n_features) -> (B, 1) float32.

    params: (w1, b1, w2, b2, w3, b3) with w_i shaped (out, in), PyTorch style.
    Biases may be (out,) or (out, 1)."""
    w1, b1, w2, b2, w3, b3 = params
    H1, in_features = w1.shape
    H2 = w2.shape[0]

    # Normalize parameter layouts to what the kernel consumes (all column
    # vectors; w3 row (1, H2) -> column (H2, 1); contiguous reshapes only).
    b1c = jnp.asarray(b1, jnp.float32).reshape(H1, 1)
    b2c = jnp.asarray(b2, jnp.float32).reshape(H2, 1)
    w3c = jnp.asarray(w3, jnp.float32).reshape(H2, 1)
    b3c = jnp.asarray(b3, jnp.float32).reshape(1, 1)
    w1 = jnp.asarray(w1, jnp.float32)
    w2 = jnp.asarray(w2, jnp.float32)

    B = state.shape[0]
    # Contiguous flatten; XLA treats this as a bitcast (no HBM copy).
    x = state.reshape(B, in_features)
    if x.dtype != input_dtype:
        x = x.astype(input_dtype)

    # Batch tile: lane-aligned (multiple of 128), capped at batch_tile.
    bt = min(int(batch_tile), _round_up(B, 128))
    Bp = _round_up(B, bt)
    if Bp != B:
        x = jnp.pad(x, ((0, Bp - B), (0, 0)))
    grid = (Bp // bt,)

    flops = 2 * Bp * (H1 * in_features + H2 * H1 + H2)
    bytes_accessed = (Bp * in_features * x.dtype.itemsize      # x stream
                      + Bp * 4                                  # output
                      + 4 * (w1.size + b1c.size + w2.size + b2c.size
                             + w3c.size + b3c.size))            # weights (once)
    cost = pl.CostEstimate(flops=flops, transcendentals=0,
                           bytes_accessed=bytes_accessed)

    const = lambda i: (0, 0)   # weights/biases: same block every step -> resident
    out = pl.pallas_call(
        _critic_kernel,
        out_shape=jax.ShapeDtypeStruct((1, Bp), jnp.float32),
        grid=grid,
        in_specs=[
            pl.BlockSpec((bt, in_features), lambda i: (i, 0)),  # x (streamed)
            pl.BlockSpec((H1, in_features), const),             # w1
            pl.BlockSpec((H1, 1), const),                       # b1
            pl.BlockSpec((H2, H1), const),                      # w2
            pl.BlockSpec((H2, 1), const),                       # b2
            pl.BlockSpec((H2, 1), const),                       # w3 (column)
            pl.BlockSpec((1, 1), const),                        # b3
        ],
        out_specs=pl.BlockSpec((1, bt), lambda i: (0, i)),
        compiler_params=pltpu.CompilerParams(
            dimension_semantics=("parallel",)),
        cost_estimate=cost,
    )(x, w1, b1c, w2, b2c, w3c, b3c)

    # (1, Bp) lane-dense kernel output -> (B, 1) module output.
    return out[0, :B].reshape(B, 1)


def init_params(key, input_size, layer_sizes, output_size=1):
    """PyTorch-Linear-style init: U(-1/sqrt(fan_in), 1/sqrt(fan_in)).

    Weights are (out, in); biases are (out, 1) (PyTorch layout)."""
    sizes = [input_size] + list(layer_sizes) + [output_size]
    params = []
    for i in range(len(sizes) - 1):
        fan_in, fan_out = sizes[i], sizes[i + 1]
        key, kw, kb = jax.random.split(key, 3)
        bound = 1.0 / (fan_in ** 0.5)
        w = jax.random.uniform(kw, (fan_out, fan_in), jnp.float32,
                               minval=-bound, maxval=bound)
        b = jax.random.uniform(kb, (fan_out, 1), jnp.float32,
                               minval=-bound, maxval=bound)
        params += [w, b]
    return tuple(params)


if __name__ == "__main__":
    # config: n_features=4, n_nodes=8 -> input_size=32; layer_sizes=[32, 16]
    n_features, n_nodes = 4, 8
    layer_sizes = [32, 16]
    batch = 2

    key = jax.random.PRNGKey(0)
    key, kstate = jax.random.split(key)
    state = jax.random.normal(kstate, (batch, n_nodes, n_features), jnp.float32)

    params = init_params(key, n_features * n_nodes, layer_sizes, output_size=1)

    out = jax.block_until_ready(critic_forward(state, params))

    # Pure-JAX reference check (weights are (out, in), biases (out, 1)).
    w1, b1, w2, b2, w3, b3 = params
    x = state.reshape(batch, -1)
    ref = jnp.maximum(x @ w1.T + b1.T, 0.0)
    ref = jnp.maximum(ref @ w2.T + b2.T, 0.0)
    ref = ref @ w3.T + b3.T
    assert out.shape == (batch, 1)
    assert jnp.allclose(out, ref, atol=1e-5, rtol=1e-5)

    # bf16 x-stream path (halves HBM traffic on this memory-bound kernel).
    out_bf16 = jax.block_until_ready(
        critic_forward(state, params, input_dtype=jnp.bfloat16))
    assert out_bf16.shape == (batch, 1)
    assert jnp.allclose(out_bf16, ref, atol=5e-2, rtol=5e-2)

    print("KERNEL_OK")
</pallas_src>

<mosaic_0001>
module attributes {stable_mosaic.version = 11 : i64} {
  func.func @_critic_kernel(%arg0: i32, %arg1: memref<128x32xf32, #tpu.memory_space<vmem>>, %arg2: memref<32x32xf32, #tpu.memory_space<vmem>>, %arg3: memref<32x1xf32, #tpu.memory_space<vmem>>, %arg4: memref<16x32xf32, #tpu.memory_space<vmem>>, %arg5: memref<16x1xf32, #tpu.memory_space<vmem>>, %arg6: memref<16x1xf32, #tpu.memory_space<vmem>>, %arg7: memref<1x1xf32, #tpu.memory_space<vmem>>, %arg8: memref<1x128xf32, #tpu.memory_space<vmem>>) attributes {dimension_semantics = [#tpu.dimension_semantics<parallel>], iteration_bounds = array<i64: 1>, scalar_prefetch = 0 : i64, scratch_operands = 0 : i64, tpu.core_type = #tpu.core_type<tc>, window_params = [{transform_indices = @transform_0, window_bounds = array<i64: 128, 32>}, {pipeline_mode = #tpu.pipeline_mode<synchronous>, transform_indices = @transform_1, window_bounds = array<i64: 32, 32>}, {pipeline_mode = #tpu.pipeline_mode<synchronous>, transform_indices = @transform_2, window_bounds = array<i64: 32, 1>}, {pipeline_mode = #tpu.pipeline_mode<synchronous>, transform_indices = @transform_3, window_bounds = array<i64: 16, 32>}, {pipeline_mode = #tpu.pipeline_mode<synchronous>, transform_indices = @transform_4, window_bounds = array<i64: 16, 1>}, {pipeline_mode = #tpu.pipeline_mode<synchronous>, transform_indices = @transform_5, window_bounds = array<i64: 16, 1>}, {pipeline_mode = #tpu.pipeline_mode<synchronous>, transform_indices = @transform_6, window_bounds = array<i64: 1, 1>}, {transform_indices = @transform_7, window_bounds = array<i64: 1, 128>}]} {
    %c0 = arith.constant 0 : index
    %c0_0 = arith.constant 0 : index
    %0 = vector.load %arg1[%c0, %c0_0] : memref<128x32xf32, #tpu.memory_space<vmem>>, vector<128x32xf32>
    %c0_1 = arith.constant 0 : index
    %c0_2 = arith.constant 0 : index
    %1 = vector.load %arg2[%c0_1, %c0_2] : memref<32x32xf32, #tpu.memory_space<vmem>>, vector<32x32xf32>
    %cst = arith.constant dense<0.000000e+00> : vector<32x128xf32>
    %2 = tpu.matmul %1, %0, %cst {dimension_numbers = #tpu.dot_dimension_numbers<[1], [1], [0], [0], [0, 0, 1, 0], [], []>} : vector<32x32xf32>, vector<128x32xf32>, vector<32x128xf32> -> vector<32x128xf32>
    %c0_3 = arith.constant 0 : index
    %c0_4 = arith.constant 0 : index
    %3 = vector.load %arg3[%c0_3, %c0_4] : memref<32x1xf32, #tpu.memory_space<vmem>>, vector<32x1xf32>
    %4 = vector.broadcast %3 : vector<32x1xf32> to vector<32x128xf32>
    %5 = arith.addf %2, %4 : vector<32x128xf32>
    %cst_5 = arith.constant 0.000000e+00 : f32
    %6 = vector.broadcast %cst_5 : f32 to vector<32x128xf32>
    %7 = arith.maximumf %5, %6 : vector<32x128xf32>
    %c0_6 = arith.constant 0 : index
    %c0_7 = arith.constant 0 : index
    %8 = vector.load %arg4[%c0_6, %c0_7] : memref<16x32xf32, #tpu.memory_space<vmem>>, vector<16x32xf32>
    %cst_8 = arith.constant dense<0.000000e+00> : vector<16x128xf32>
    %9 = tpu.matmul %8, %7, %cst_8 {dimension_numbers = #tpu.dot_dimension_numbers<[1], [0], [0], [1], [0, 0, 1, 1], [], []>} : vector<16x32xf32>, vector<32x128xf32>, vector<16x128xf32> -> vector<16x128xf32>
    %c0_9 = arith.constant 0 : index
    %c0_10 = arith.constant 0 : index
    %10 = vector.load %arg5[%c0_9, %c0_10] : memref<16x1xf32, #tpu.memory_space<vmem>>, vector<16x1xf32>
    %11 = vector.broadcast %10 : vector<16x1xf32> to vector<16x128xf32>
    %12 = arith.addf %9, %11 : vector<16x128xf32>
    %cst_11 = arith.constant 0.000000e+00 : f32
    %13 = vector.broadcast %cst_11 : f32 to vector<16x128xf32>
    %14 = arith.maximumf %12, %13 : vector<16x128xf32>
    %c0_12 = arith.constant 0 : index
    %c0_13 = arith.constant 0 : index
    %15 = vector.load %arg6[%c0_12, %c0_13] : memref<16x1xf32, #tpu.memory_space<vmem>>, vector<16x1xf32>
    %16 = vector.broadcast %15 : vector<16x1xf32> to vector<16x128xf32>
    %17 = arith.mulf %14, %16 : vector<16x128xf32>
    %cst_14 = arith.constant dense<0.000000e+00> : vector<128xf32>
    %18 = vector.multi_reduction <add>, %17, %cst_14 [0] : vector<16x128xf32> to vector<128xf32>
    %19 = vector.shape_cast %18 : vector<128xf32> to vector<1x128xf32>
    %c0_15 = arith.constant 0 : index
    %c0_16 = arith.constant 0 : index
    %20 = vector.load %arg7[%c0_15, %c0_16] : memref<1x1xf32, #tpu.memory_space<vmem>>, vector<1x1xf32>
    %21 = vector.broadcast %20 : vector<1x1xf32> to vector<1x128xf32>
    %22 = arith.addf %19, %21 : vector<1x128xf32>
    %c0_17 = arith.constant 0 : index
    %c0_18 = arith.constant 0 : index
    %23 = vector.load %arg8[%c0_17, %c0_18] : memref<1x128xf32, #tpu.memory_space<vmem>>, vector<1x128xf32>
    tpu.vector_store %arg8[%c0_17, %c0_18], %22 {strides = array<i32>} : memref<1x128xf32, #tpu.memory_space<vmem>>, vector<1x128xf32>,
    return
  }
  func.func @transform_0(%arg0: i32) -> (i32, i32) {
    %c0_i32 = arith.constant 0 : i32
    %c0_i32_0 = arith.constant 0 : i32
    return %arg0, %c0_i32 : i32, i32
  }
  func.func @transform_1(%arg0: i32) -> (i32, i32) {
    %c0_i32 = arith.constant 0 : i32
    %c0_i32_0 = arith.constant 0 : i32
    %c0_i32_1 = arith.constant 0 : i32
    return %c0_i32, %c0_i32_0 : i32, i32
  }
  func.func @transform_2(%arg0: i32) -> (i32, i32) {
    %c0_i32 = arith.constant 0 : i32
    %c0_i32_0 = arith.constant 0 : i32
    %c0_i32_1 = arith.constant 0 : i32
    return %c0_i32, %c0_i32_0 : i32, i32
  }
  func.func @transform_3(%arg0: i32) -> (i32, i32) {
    %c0_i32 = arith.constant 0 : i32
    %c0_i32_0 = arith.constant 0 : i32
    %c0_i32_1 = arith.constant 0 : i32
    return %c0_i32, %c0_i32_0 : i32, i32
  }
  func.func @transform_4(%arg0: i32) -> (i32, i32) {
    %c0_i32 = arith.constant 0 : i32
    %c0_i32_0 = arith.constant 0 : i32
    %c0_i32_1 = arith.constant 0 : i32
    return %c0_i32, %c0_i32_0 : i32, i32
  }
  func.func @transform_5(%arg0: i32) -> (i32, i32) {
    %c0_i32 = arith.constant 0 : i32
    %c0_i32_0 = arith.constant 0 : i32
    %c0_i32_1 = arith.constant 0 : i32
    return %c0_i32, %c0_i32_0 : i32, i32
  }
  func.func @transform_6(%arg0: i32) -> (i32, i32) {
    %c0_i32 = arith.constant 0 : i32
    %c0_i32_0 = arith.constant 0 : i32
    %c0_i32_1 = arith.constant 0 : i32
    return %c0_i32, %c0_i32_0 : i32, i32
  }
  func.func @transform_7(%arg0: i32) -> (i32, i32) {
    %c0_i32 = arith.constant 0 : i32
    %c0_i32_0 = arith.constant 0 : i32
    return %c0_i32, %arg0 : i32, i32
  }
}

</mosaic_0001>

<llo_original>
// kernel: tpu_custom_call.1
$region0: #{tpu_custom_call.1}
  #allocation0 [shape = 'u32[]', space=smem, size = 0x4, offset = 0x4, fixed_abs, tag = 'smem constant byte address 0x4 - core index']
  #allocation1 [shape = 'u32[144,128]{1,0:T(1,128)}', space=vmem, size = 0x12000, scoped, tag = 'internal scratch']
  #allocation2 [shape = 'f32[1,1]{1,0:T(1,128)S(1)}', space=vmem, size = 0x200, scoped, tag = 'scoped memory for tpu_custom_call.1']
  %s0 = inlined_call_operand.vmem [shape: f32[128,32], index: 0, kind: input, shape index: {}]
  %s1 = inlined_call_operand.vmem [shape: f32[32,32], index: 1, kind: input, shape index: {}]
  %s2 = inlined_call_operand.vmem [shape: f32[32,1], index: 2, kind: input, shape index: {}]
  %s3 = inlined_call_operand.vmem [shape: f32[16,32], index: 3, kind: input, shape index: {}]
  %s4 = inlined_call_operand.vmem [shape: f32[16,1], index: 4, kind: input, shape index: {}]
  %s5 = inlined_call_operand.vmem [shape: f32[16,1], index: 5, kind: input, shape index: {}]
  %s6 = inlined_call_operand.<no memory space> [shape: f32[1,1], index: 6, kind: input, shape index: {}]
  %s7 = inlined_call_operand.hbm [shape: f32[1,128], index: 7, kind: output, shape index: {}]
  %s8 = sld [smem:[#allocation0]]
  $region38: #{tpu_custom_call.1} parent=0
    _
  %s10 = ssub.s32 1, %s8
  %s11 = scalar_select 0, %s10, %s8
  %v12 = vstv %s6
  %13 = vst [vmem:[#allocation2] sm:$0x1] %v12
  $region1: #{tpu_custom_call.1} parent=0
    #allocation3 [shape = 'u8[512]{0}', space=vmem, size = 0x400, scoped, tag = 'output window, operand 0, single buffered']
    #allocation4 [shape = 's32[1]{0}', space=sflag, size = 0x4, scoped, tag = 'scoped memory for tpu_custom_call.1']
    %14 = vsyncpa [#allocation4], 0
    // Predicated region
    $region2: #{tpu_custom_call.1} parent=1 // pred_check
      _
    $region3: #{tpu_custom_call.1} parent=1 // pred_check_branch
      %16 = sbr.rel (0) target = $region5
    $region4: #{tpu_custom_call.1} parent=1 // pred_region
      _
    $region5: #{tpu_custom_call.1} parent=1 // pred_fallthru
      _
    // Predicated region
    $region6: #{tpu_custom_call.1} parent=1 // pred_check
      _
    $region7: #{tpu_custom_call.1} parent=1 // pred_check_branch
      %18 = sbr.rel (0) target = $region9
    $region8: #{tpu_custom_call.1} parent=1 // pred_region
      _
    $region9: #{tpu_custom_call.1} parent=1 // pred_fallthru
      _
    // Predicated region
    $region10: #{tpu_custom_call.1} parent=1 // pred_check
      _
    $region11: #{tpu_custom_call.1} parent=1 // pred_check_branch
      %20 = sbr.rel (0) target = $region13
    $region12: #{tpu_custom_call.1} parent=1 // pred_region
      _
    $region13: #{tpu_custom_call.1} parent=1 // pred_fallthru
      _
    // Predicated region
    $region14: #{tpu_custom_call.1} parent=1 // pred_check
      _
    $region15: #{tpu_custom_call.1} parent=1 // pred_check_branch
      %22 = sbr.rel (0) target = $region17
    $region16: #{tpu_custom_call.1} parent=1 // pred_region
      _
    $region17: #{tpu_custom_call.1} parent=1 // pred_fallthru
      _
    // Predicated region
    $region18: #{tpu_custom_call.1} parent=1 // pred_check
      _
    $region19: #{tpu_custom_call.1} parent=1 // pred_check_branch
      %24 = sbr.rel (0) target = $region21
    $region20: #{tpu_custom_call.1} parent=1 // pred_region
      _
    $region21: #{tpu_custom_call.1} parent=1 // pred_fallthru
      _
    // Predicated region
    $region22: #{tpu_custom_call.1} parent=1 // pred_check
      _
    $region23: #{tpu_custom_call.1} parent=1 // pred_check_branch
      %26 = sbr.rel (0) target = $region25
    $region24: #{tpu_custom_call.1} parent=1 // pred_region
      _
    $region25: #{tpu_custom_call.1} parent=1 // pred_fallthru
      _
    // Predicated region
    $region26: #{tpu_custom_call.1} parent=1 // pred_check
      _
    $region27: #{tpu_custom_call.1} parent=1 // pred_check_branch
      %28 = sbr.rel (0) target = $region29
    $region28: #{tpu_custom_call.1} parent=1 // pred_region
      _
    $region29: #{tpu_custom_call.1} parent=1 // pred_fallthru
      _
    %v29 = vld [vmem:[%s0] sm:$0xff]
    %v30 = vld [vmem:[%s0 + $0x8] sm:$0xff]
    %v31 = vld [vmem:[%s0 + $0x10] sm:$0xff]
    %v32 = vld [vmem:[%s0 + $0x18] sm:$0xff]
    %v33 = vld [vmem:[%s0 + $0x20] sm:$0xff]
    %v34 = vld [vmem:[%s0 + $0x28] sm:$0xff]
    %v35 = vld [vmem:[%s0 + $0x30] sm:$0xff]
    %v36 = vld [vmem:[%s0 + $0x38] sm:$0xff]
    %v37 = vld [vmem:[%s0 + $0x40] sm:$0xff]
    %v38 = vld [vmem:[%s0 + $0x48] sm:$0xff]
    %v39 = vld [vmem:[%s0 + $0x50] sm:$0xff]
    %v40 = vld [vmem:[%s0 + $0x58] sm:$0xff]
    %v41 = vld [vmem:[%s0 + $0x60] sm:$0xff]
    %v42 = vld [vmem:[%s0 + $0x68] sm:$0xff]
    %v43 = vld [vmem:[%s0 + $0x70] sm:$0xff]
    %v44 = vld [vmem:[%s0 + $0x78] sm:$0xff]
    %v45 = vld [vmem:[%s1] sm:$0xff]
    %v46 = vld [vmem:[%s1 + $0x8] sm:$0xff]
    %v47 = vld [vmem:[%s1 + $0x10] sm:$0xff]
    %v48 = vld [vmem:[%s1 + $0x18] sm:$0xff]
    %v49 = vld [vmem:[%s2] sm:$0xff]
    %v50 = vld [vmem:[%s2 + $0x8] sm:$0xff]
    %v51 = vld [vmem:[%s2 + $0x10] sm:$0xff]
    %v52 = vld [vmem:[%s2 + $0x18] sm:$0xff]
    %54 = vset.pattern.permute.xlu0 0
    %55 = vperm.xlu0 %54, %v49
    %v56 = vpop.permute.xlu0 %55
    %59 = vset.pattern.permute.xlu0 0
    %60 = vperm.xlu0 %59, %v50
    %v61 = vpop.permute.xlu0 %60
    %64 = vset.pattern.permute.xlu0 0
    %65 = vperm.xlu0 %64, %v51
    %v66 = vpop.permute.xlu0 %65
    %69 = vset.pattern.permute.xlu0 0
    %70 = vperm.xlu0 %69, %v52
    %v71 = vpop.permute.xlu0 %70
    %vm73 = vcmask 261120
    %v75 = vsel %vm73, %v45, 0
    %v78 = vsel %vm73, %v46, 0
    %v81 = vsel %vm73, %v47, 0
    %v84 = vsel %vm73, %v48, 0
    %v87 = vsel %vm73, %v29, 0
    %v90 = vsel %vm73, %v30, 0
    %v93 = vsel %vm73, %v31, 0
    %v96 = vsel %vm73, %v32, 0
    %v99 = vsel %vm73, %v33, 0
    %v102 = vsel %vm73, %v34, 0
    %v105 = vsel %vm73, %v35, 0
    %v108 = vsel %vm73, %v36, 0
    %v111 = vsel %vm73, %v37, 0
    %v114 = vsel %vm73, %v38, 0
    %v117 = vsel %vm73, %v39, 0
    %v120 = vsel %vm73, %v40, 0
    %v123 = vsel %vm73, %v41, 0
    %v126 = vsel %vm73, %v42, 0
    %v129 = vsel %vm73, %v43, 0
    %v132 = vsel %vm73, %v44, 0
    %134 = vmatprep.subr.mxu0 0.0
    %135 = vmatpush1.xpose.msra.mxu0 %v87
    %136 = vmatprep.subr.mxu0 0.0
    %137 = vmatpush1.xpose.msra.mxu0 %v90
    %138 = vmatprep.subr.mxu0 0.0
    %139 = vmatpush1.xpose.msra.mxu0 %v93
    %140 = vmatprep.subr.mxu0 0.0
    %141 = vmatpush1.xpose.msra.mxu0 %v96
    %142 = vmatprep.subr.mxu0 0.0
    %143 = vmatpush1.xpose.msra.mxu0 %v99
    %144 = vmatprep.subr.mxu0 0.0
    %145 = vmatpush1.xpose.msra.mxu0 %v102
    %146 = vmatprep.subr.mxu0 0.0
    %147 = vmatpush1.xpose.msra.mxu0 %v105
    %148 = vmatprep.subr.mxu0 0.0
    %149 = vmatpush1.xpose.msra.mxu0 %v108
    %150 = vmatprep.subr.mxu0 0.0
    %151 = vmatpush1.xpose.msra.mxu0 %v111
    %152 = vmatprep.subr.mxu0 0.0
    %153 = vmatpush1.xpose.msra.mxu0 %v114
    %154 = vmatprep.subr.mxu0 0.0
    %155 = vmatpush1.xpose.msra.mxu0 %v117
    %156 = vmatprep.subr.mxu0 0.0
    %157 = vmatpush1.xpose.msra.mxu0 %v120
    %158 = vmatprep.subr.mxu0 0.0
    %159 = vmatpush1.xpose.msra.mxu0 %v123
    %160 = vmatprep.subr.mxu0 0.0
    %161 = vmatpush1.xpose.msra.mxu0 %v126
    %162 = vmatprep.subr.mxu0 0.0
    %163 = vmatpush1.xpose.msra.mxu0 %v129
    %164 = vmatprep.subr.mxu0 0.0
    %165 = vmatpush1.xpose.msra.mxu0 %v132
    %166 = vmatprep.subr.mxu0 0.0
    %167 = vmatpush1.xpose.msra.mxu0 0.0
    %168 = vmatprep.subr.mxu0 0.0
    %169 = vmatpush1.xpose.msra.mxu0 0.0
    %170 = vmatprep.subr.mxu0 0.0
    %171 = vmatpush1.xpose.msra.mxu0 0.0
    %172 = vmatprep.subr.mxu0 0.0
    %173 = vmatpush1.xpose.msra.mxu0 0.0
    %174 = vmatprep.subr.mxu0 0.0
    %175 = vmatpush1.xpose.msra.mxu0 0.0
    %176 = vmatprep.subr.mxu0 0.0
    %177 = vmatpush1.xpose.msra.mxu0 0.0
    %178 = vmatprep.subr.mxu0 0.0
    %179 = vmatpush1.xpose.msra.mxu0 0.0
    %180 = vmatprep.subr.mxu0 0.0
    %181 = vmatpush1.xpose.msra.mxu0 0.0
    %182 = vmatprep.subr.mxu0 0.0
    %183 = vmatpush1.xpose.msra.mxu0 0.0
    %184 = vmatprep.subr.mxu0 0.0
    %185 = vmatpush1.xpose.msra.mxu0 0.0
    %186 = vmatprep.subr.mxu0 0.0
    %187 = vmatpush1.xpose.msra.mxu0 0.0
    %188 = vmatprep.subr.mxu0 0.0
    %189 = vmatpush1.xpose.msra.mxu0 0.0
    %190 = vmatprep.subr.mxu0 0.0
    %191 = vmatpush1.xpose.msra.mxu0 0.0
    %192 = vmatprep.subr.mxu0 0.0
    %193 = vmatpush1.xpose.msra.mxu0 0.0
    %194 = vmatprep.subr.mxu0 0.0
    %195 = vmatpush1.xpose.msra.mxu0 0.0
    %196 = vmatprep.subr.mxu0 0.0
    %197 = vmatpush1.xpose.msra.mxu0 0.0
    %198 = vmatprep.mubr.f32.mxu0 0.0
    %199 = vmatmul.mubr.f32.gmra.mrb[0].mxu0 %v75
    %v200 = vpop.f32.mrb[0].mxu0
    %v201 = vadd.f32 %v56, %v200
    %v202 = vpop.f32.mrb[0].mxu0
    %203 = vmatprep.mubr.f32.mxu0 0.0
    %204 = vmatmul.mubr.f32.gmra.mrb[0].mxu0 %v78
    %v205 = vpop.f32.mrb[0].mxu0
    %v206 = vadd.f32 %v61, %v205
    %v207 = vpop.f32.mrb[0].mxu0
    %208 = vmatprep.mubr.f32.mxu0 0.0
    %209 = vmatmul.mubr.f32.gmra.mrb[0].mxu0 %v81
    %v210 = vpop.f32.mrb[0].mxu0
    %v211 = vadd.f32 %v66, %v210
    %v212 = vpop.f32.mrb[0].mxu0
    %213 = vmatprep.mubr.f32.mxu0 0.0
    %214 = vmatmul.mubr.f32.gmra.mrb[0].mxu0 %v84
    %v215 = vpop.f32.mrb[0].mxu0
    %v216 = vadd.f32 %v71, %v215
    %v217 = vpop.f32.mrb[0].mxu0
    %218 = vdwg.mxu0
    %v219 = vmax.f32 %v201, 0.0
    %v220 = vmax.f32 %v206, 0.0
    %v221 = vmax.f32 %v211, 0.0
    %v222 = vmax.f32 %v216, 0.0
    %v223 = vld [vmem:[%s3] sm:$0xff]
    %v224 = vld [vmem:[%s3 + $0x8] sm:$0xff]
    %v225 = vld [vmem:[%s4] sm:$0xff]
    %v226 = vld [vmem:[%s4 + $0x8] sm:$0xff]
    %228 = vset.pattern.permute.xlu0 0
    %229 = vperm.xlu0 %228, %v225
    %v230 = vpop.permute.xlu0 %229
    %233 = vset.pattern.permute.xlu0 0
    %234 = vperm.xlu0 %233, %v226
    %v235 = vpop.permute.xlu0 %234
    %v238 = vsel %vm73, %v223, 0
    %v241 = vsel %vm73, %v224, 0
    %243 = vmatprep.subr.mxu0 0.0
    %244 = vmatpush1.msra.mxu0 %v219
    %245 = vmatprep.subr.mxu0 0.0
    %246 = vmatpush1.msra.mxu0 %v220
    %247 = vmatprep.subr.mxu0 0.0
    %248 = vmatpush1.msra.mxu0 %v221
    %249 = vmatprep.subr.mxu0 0.0
    %250 = vmatpush1.msra.mxu0 %v222
    %251 = vmatprep.subr.mxu0 0.0
    %252 = vmatpush1.msra.mxu0 0.0
    %253 = vmatprep.subr.mxu0 0.0
    %254 = vmatpush1.msra.mxu0 0.0
    %255 = vmatprep.subr.mxu0 0.0
    %256 = vmatpush1.msra.mxu0 0.0
    %257 = vmatprep.subr.mxu0 0.0
    %258 = vmatpush1.msra.mxu0 0.0
    %259 = vmatprep.subr.mxu0 0.0
    %260 = vmatpush1.msra.mxu0 0.0
    %261 = vmatprep.subr.mxu0 0.0
    %262 = vmatpush1.msra.mxu0 0.0
    %263 = vmatprep.subr.mxu0 0.0
    %264 = vmatpush1.msra.mxu0 0.0
    %265 = vmatprep.subr.mxu0 0.0
    %266 = vmatpush1.msra.mxu0 0.0
    %267 = vmatprep.subr.mxu0 0.0
    %268 = vmatpush1.msra.mxu0 0.0
    %269 = vmatprep.subr.mxu0 0.0
    %270 = vmatpush1.msra.mxu0 0.0
    %271 = vmatprep.subr.mxu0 0.0
    %272 = vmatpush1.msra.mxu0 0.0
    %273 = vmatprep.subr.mxu0 0.0
    %274 = vmatpush1.msra.mxu0 0.0
    %275 = vmatprep.subr.mxu0 0.0
    %276 = vmatpush1.msra.mxu0 0.0
    %277 = vmatprep.subr.mxu0 0.0
    %278 = vmatpush1.msra.mxu0 0.0
    %279 = vmatprep.subr.mxu0 0.0
    %280 = vmatpush1.msra.mxu0 0.0
    %281 = vmatprep.subr.mxu0 0.0
    %282 = vmatpush1.msra.mxu0 0.0
    %283 = vmatprep.subr.mxu0 0.0
    %284 = vmatpush1.msra.mxu0 0.0
    %285 = vmatprep.subr.mxu0 0.0
    %286 = vmatpush1.msra.mxu0 0.0
    %287 = vmatprep.subr.mxu0 0.0
    %288 = vmatpush1.msra.mxu0 0.0
    %289 = vmatprep.subr.mxu0 0.0
    %290 = vmatpush1.msra.mxu0 0.0
    %291 = vmatprep.subr.mxu0 0.0
    %292 = vmatpush1.msra.mxu0 0.0
    %293 = vmatprep.subr.mxu0 0.0
    %294 = vmatpush1.msra.mxu0 0.0
    %295 = vmatprep.subr.mxu0 0.0
    %296 = vmatpush1.msra.mxu0 0.0
    %297 = vmatprep.subr.mxu0 0.0
    %298 = vmatpush1.msra.mxu0 0.0
    %299 = vmatprep.subr.mxu0 0.0
    %300 = vmatpush1.msra.mxu0 0.0
    %301 = vmatprep.subr.mxu0 0.0
    %302 = vmatpush1.msra.mxu0 0.0
    %303 = vmatprep.subr.mxu0 0.0
    %304 = vmatpush1.msra.mxu0 0.0
    %305 = vmatprep.subr.mxu0 0.0
    %306 = vmatpush1.msra.mxu0 0.0
    %307 = vmatprep.mubr.f32.mxu0 0.0
    %308 = vmatmul.mubr.f32.gmra.mrb[0].mxu0 %v238
    %v309 = vpop.f32.mrb[0].mxu0
    %v310 = vadd.f32 %v230, %v309
    %v311 = vpop.f32.mrb[0].mxu0
    %312 = vmatprep.mubr.f32.mxu0 0.0
    %313 = vmatmul.mubr.f32.gmra.mrb[0].mxu0 %v241
    %v314 = vpop.f32.mrb[0].mxu0
    %v315 = vadd.f32 %v235, %v314
    %v316 = vpop.f32.mrb[0].mxu0
    %317 = vdwg.mxu0
    %v318 = vmax.f32 %v310, 0.0
    %v319 = vmax.f32 %v315, 0.0
    %v320 = vld [vmem:[%s5] sm:$0xff]
    %v321 = vld [vmem:[%s5 + $0x8] sm:$0xff]
    %323 = vset.pattern.permute.xlu0 0
    %324 = vperm.xlu0 %323, %v320
    %v325 = vpop.permute.xlu0 %324
    %328 = vset.pattern.permute.xlu0 0
    %329 = vperm.xlu0 %328, %v321
    %v330 = vpop.permute.xlu0 %329
    %v332 = vmul.f32 %v318, %v325
    %v333 = vmul.f32 %v319, %v330
    %v334 = vadd.f32 %v332, %v333
    %v335 = vrot.slane %v334, 4
    %v336 = vadd.f32 %v334, %v335
    %v337 = vrot.slane %v336, 2
    %v338 = vadd.f32 %v336, %v337
    %v339 = vrot.slane %v338, 1
    %v340 = vadd.f32 %v338, %v339
    %v341 = vld [vmem:[#allocation2] sm:$0x1]
    %343 = vset.pattern.permute.xlu0 0
    %344 = vperm.xlu0 %343, %v341
    %v345 = vpop.permute.xlu0 %344
    %v347 = vlaneseq
    %v348 = vshrl.u32 %v347, 7
    %v349 = vsub.s32 0, %v348
    %v350 = vrot.slane %v345, %v349
    %v351 = vadd.f32 %v340, %v350
    %352 = vst [vmem:[#allocation3] sm:$0x1] %v351
    // Predicated region
    $region30: #{tpu_custom_call.1} parent=1 // pred_check
      _
    $region31: #{tpu_custom_call.1} parent=1 // pred_check_branch
      %354 = sbr.rel (0) target = $region33
    $region32: #{tpu_custom_call.1} parent=1 // pred_region
      %s356 = ssub.s32 16, 16
      %357 = vsyncadd [#allocation4], %s356
      %s359 = sshll.u32 [#allocation3], 4
      %s360 = int_to_ptr.vmem [resolvable:$true] %s359
      %362 = dma.vmem_to_hbm [thread:$0]  %s360, 16, %s7, [#allocation4]
    $region33: #{tpu_custom_call.1} parent=1 // pred_fallthru
      _
    // Predicated region
    $region34: #{tpu_custom_call.1} parent=1 // pred_check
      _
    $region35: #{tpu_custom_call.1} parent=1 // pred_check_branch
      %364 = sbr.rel (0) target = $region37
    $region36: #{tpu_custom_call.1} parent=1 // pred_region
      %365 = dma.done [#allocation4], 16
    $region37: #{tpu_custom_call.1} parent=1 // pred_fallthru
      _
    %366 = vsyncpa [#allocation4], 1

</llo_original>
